<compile_context>
chip_gen: v7x
topology: tpu7x:2x2x1
jax: 0.10.0
libtpu: 0.0.40
codegen_flags: <defaults>
</compile_context>

<pallas_src>
import math

import jax
import jax.numpy as jnp
from jax import lax
from jax.experimental import pallas as pl
from jax.experimental.pallas import tpu as pltpu

_EPS = 1e-12  # F.normalize default eps


def _round_up(a: int, b: int) -> int:
    return (a + b - 1) // b * b


def _cosine_linear_kernel(sigma_ref, x_ref, w_ref, wsq_ref, o_ref, acc_ref, xsq_ref):
    """One (i, j, k) grid step of the cosine-similarity GEMM.

    sigma_ref: SMEM (1,)         scale parameter
    x_ref:     VMEM (tm, tk)     input tile
    w_ref:     VMEM (tn, tk)     weight tile
    wsq_ref:   VMEM (1, tn)      precomputed per-output-row sum(w*w)
    o_ref:     VMEM (tm, tn)     output tile (written only at k == last)
    acc_ref:   VMEM (tm, tn) f32 dot-product accumulator (scratch)
    xsq_ref:   VMEM (tm, 1)  f32 per-input-row sum(x*x) accumulator (scratch)
    """
    k = pl.program_id(2)

    @pl.when(k == 0)
    def _init():
        acc_ref[...] = jnp.zeros_like(acc_ref)
        xsq_ref[...] = jnp.zeros_like(xsq_ref)

    x = x_ref[...]
    w = w_ref[...]

    # Unnormalized dot products on the MXU: bf16 operands, f32 accumulation.
    # Contract the last (lane) dim of both operands -> no transpose / relayout of W.
    acc_ref[...] += lax.dot_general(
        x.astype(jnp.bfloat16),
        w.astype(jnp.bfloat16),
        dimension_numbers=(((1,), (1,)), ((), ())),
        preferred_element_type=jnp.float32,
    )

    # Per-row sum of squares of x, accumulated over K tiles (XLU lane reduce,
    # overlaps with MXU work).  Kept in f32 regardless of the input dtype.
    xf = x.astype(jnp.float32)
    xsq_ref[...] += jnp.sum(xf * xf, axis=1, keepdims=True)

    @pl.when(k == pl.num_programs(2) - 1)
    def _finalize():
        # 1 / max(||v||, eps) == rsqrt(max(sum(v*v), eps^2))  (matches F.normalize).
        inv_x = lax.rsqrt(jnp.maximum(xsq_ref[...], _EPS * _EPS))   # (tm, 1)
        inv_w = lax.rsqrt(jnp.maximum(wsq_ref[...], _EPS * _EPS))   # (1, tn)
        row_scale = inv_x * sigma_ref[0]                            # fold sigma in
        o_ref[...] = (acc_ref[...] * row_scale * inv_w).astype(o_ref.dtype)


def cosine_linear(x, weight, sigma=None, weight_sq=None, *, tm=None, tn=None, tk=None):
    """sigma * (normalize(x, dim=1) @ normalize(weight, dim=1).T).

    x:         (B, in_features)
    weight:    (out_features, in_features)
    sigma:     (1,) scalar parameter, or None (treated as 1.0, i.e. sigma=False).
    weight_sq: optional (out_features,) precomputed sum(weight**2, axis=1); since
               weight is a layer parameter, cache this across forward calls.
    """
    B, K = x.shape
    N, Kw = weight.shape
    assert K == Kw, (x.shape, weight.shape)

    if sigma is None:
        sigma = jnp.ones((1,), jnp.float32)
    sigma = sigma.reshape((1,)).astype(jnp.float32)

    if weight_sq is None:
        # In a real layer this is computed once per weight update and cached.
        weight_sq = jnp.sum(weight.astype(jnp.float32) ** 2, axis=1)

    # Tile sizes: lane-dense output (tn multiple of 128), sublane-aligned tm, K tiles
    # multiples of 128.  Caps keep the double-buffered working set at a few MiB so the
    # same defaults fit v5e/v6e (128 MiB VMEM) and v7x (64 MiB per TensorCore).
    if tm is None:
        tm = min(_round_up(B, 8), 256)
    if tn is None:
        tn = min(_round_up(N, 128), 512)
    if tk is None:
        tk = min(_round_up(K, 128), 512)

    Mp, Np, Kp = _round_up(B, tm), _round_up(N, tn), _round_up(K, tk)

    # Zero padding is exact: padded K columns add 0 to every dot product and every
    # sum-of-squares; padded rows yield zeros (guarded by eps) and are sliced off.
    xp = x if (Mp == B and Kp == K) else jnp.pad(x, ((0, Mp - B), (0, Kp - K)))
    wp = weight if (Np == N and Kp == K) else jnp.pad(weight, ((0, Np - N), (0, Kp - K)))
    wsq = jnp.zeros((1, Np), jnp.float32).at[0, :N].set(weight_sq.astype(jnp.float32))

    grid = (Mp // tm, Np // tn, Kp // tk)

    out_p = pl.pallas_call(
        _cosine_linear_kernel,
        out_shape=jax.ShapeDtypeStruct((Mp, Np), x.dtype),
        grid=grid,
        in_specs=[
            pl.BlockSpec(memory_space=pltpu.SMEM),                 # sigma (1,)
            pl.BlockSpec((tm, tk), lambda i, j, k: (i, k)),        # x tile
            pl.BlockSpec((tn, tk), lambda i, j, k: (j, k)),        # W tile
            pl.BlockSpec((1, tn), lambda i, j, k: (0, j)),         # sum(W*W) tile
        ],
        out_specs=pl.BlockSpec((tm, tn), lambda i, j, k: (i, j)),
        scratch_shapes=[
            pltpu.VMEM((tm, tn), jnp.float32),                     # dot accumulator
            pltpu.VMEM((tm, 1), jnp.float32),                      # sum(x*x) accumulator
        ],
        compiler_params=pltpu.CompilerParams(
            dimension_semantics=("parallel", "parallel", "arbitrary"),
            vmem_limit_bytes=48 * 1024 * 1024,
        ),
    )(sigma, xp, wp, wsq)

    return out_p[:B, :N]


def _reference_pytorch(x, weight, sigma):
    """Literal PyTorch formulation: sigma * F.linear(normalize(x), normalize(W))."""
    xn = x / jnp.maximum(jnp.linalg.norm(x, axis=1, keepdims=True), _EPS)
    wn = weight / jnp.maximum(jnp.linalg.norm(weight, axis=1, keepdims=True), _EPS)
    return sigma[0] * jnp.dot(xn, wn.T, precision="highest")


def _reference_bf16_operands(x, weight, sigma):
    """Same algebra as the kernel (normalize after the dot) with the same bf16
    operand rounding fed to the MXU; matches the kernel up to f32 summation order."""
    inv_x = 1.0 / jnp.maximum(jnp.linalg.norm(x, axis=1, keepdims=True), _EPS)
    inv_w = 1.0 / jnp.maximum(jnp.linalg.norm(weight, axis=1, keepdims=True), _EPS)
    dots = jnp.dot(x.astype(jnp.bfloat16), weight.astype(jnp.bfloat16).T,
                   preferred_element_type=jnp.float32)
    return sigma[0] * dots * inv_x * inv_w.T


if __name__ == "__main__":
    # Small shapes consistent with the module's forward: x is (B, in_features).
    B, in_features, out_features = 8, 32, 16

    key = jax.random.PRNGKey(0)
    kx, kw = jax.random.split(key)

    x = jax.random.normal(kx, (B, in_features), dtype=jnp.float32)

    # Mirror reset_parameters(): W ~ U(-stdv, stdv), stdv = 1/sqrt(in_features); sigma = 1.
    stdv = 1.0 / math.sqrt(in_features)
    weight = jax.random.uniform(kw, (out_features, in_features), dtype=jnp.float32,
                                minval=-stdv, maxval=stdv)
    sigma = jnp.ones((1,), dtype=jnp.float32)

    out = jax.block_until_ready(cosine_linear(x, weight, sigma))
    assert out.shape == (B, out_features)
    assert bool(jnp.isfinite(out).all())

    # Tight check: reference using the same bf16 MXU operand rounding as the kernel.
    tight = _reference_bf16_operands(x, weight, sigma)
    assert jnp.allclose(out, tight, atol=5e-5, rtol=5e-5), "mismatch vs bf16-operand reference"

    # Semantic check: literal PyTorch float32 formulation. Tolerance reflects the
    # deliberate bf16 cast of the MXU operands (norm math / accumulation stay f32).
    ref = _reference_pytorch(x, weight, sigma)
    assert jnp.allclose(out, ref, atol=1e-2, rtol=1e-2), "mismatch vs PyTorch-semantics reference"

    print("KERNEL_OK")
</pallas_src>

<mosaic_0001>
module attributes {stable_mosaic.version = 11 : i64} {
  func.func @_cosine_linear_kernel(%arg0: i32, %arg1: i32, %arg2: i32, %arg3: memref<1xf32, #tpu.memory_space<smem>>, %arg4: memref<8x128xf32, #tpu.memory_space<vmem>>, %arg5: memref<128x128xf32, #tpu.memory_space<vmem>>, %arg6: memref<1x128xf32, #tpu.memory_space<vmem>>, %arg7: memref<8x128xf32, #tpu.memory_space<vmem>>, %arg8: memref<8x128xf32, #tpu.memory_space<vmem>>, %arg9: memref<8x1xf32, #tpu.memory_space<vmem>>) attributes {dimension_semantics = [#tpu.dimension_semantics<parallel>, #tpu.dimension_semantics<parallel>, #tpu.dimension_semantics<arbitrary>], iteration_bounds = array<i64: 1, 1, 1>, scalar_prefetch = 0 : i64, scratch_operands = 2 : i64, tpu.core_type = #tpu.core_type<tc>, window_params = [{transform_indices = @transform_0, window_bounds = array<i64: 1>}, {transform_indices = @transform_1, window_bounds = array<i64: 8, 128>}, {transform_indices = @transform_2, window_bounds = array<i64: 128, 128>}, {transform_indices = @transform_3, window_bounds = array<i64: 1, 128>}, {transform_indices = @transform_4, window_bounds = array<i64: 8, 128>}]} {
    %c0_i32 = arith.constant 0 : i32
    %0 = arith.cmpi eq, %arg2, %c0_i32 : i32
    %1 = arith.extui %0 : i1 to i32
    %c0_i32_0 = arith.constant 0 : i32
    %2 = arith.cmpi ne, %1, %c0_i32_0 : i32
    scf.if %2 {
      %cst_15 = arith.constant 0.000000e+00 : f32
      %20 = vector.broadcast %cst_15 : f32 to vector<8x128xf32>
      %c0_16 = arith.constant 0 : index
      %c0_17 = arith.constant 0 : index
      %21 = vector.load %arg8[%c0_16, %c0_17] : memref<8x128xf32, #tpu.memory_space<vmem>>, vector<8x128xf32>
      tpu.vector_store %arg8[%c0_16, %c0_17], %20 {strides = array<i32>} : memref<8x128xf32, #tpu.memory_space<vmem>>, vector<8x128xf32>,
      %cst_18 = arith.constant 0.000000e+00 : f32
      %22 = vector.broadcast %cst_18 : f32 to vector<8x1xf32>
      %c0_19 = arith.constant 0 : index
      %c0_20 = arith.constant 0 : index
      %23 = vector.load %arg9[%c0_19, %c0_20] : memref<8x1xf32, #tpu.memory_space<vmem>>, vector<8x1xf32>
      tpu.vector_store %arg9[%c0_19, %c0_20], %22 {strides = array<i32>} : memref<8x1xf32, #tpu.memory_space<vmem>>, vector<8x1xf32>,
    } else {
    }
    %c0 = arith.constant 0 : index
    %c0_1 = arith.constant 0 : index
    %3 = vector.load %arg4[%c0, %c0_1] : memref<8x128xf32, #tpu.memory_space<vmem>>, vector<8x128xf32>
    %c0_2 = arith.constant 0 : index
    %c0_3 = arith.constant 0 : index
    %4 = vector.load %arg5[%c0_2, %c0_3] : memref<128x128xf32, #tpu.memory_space<vmem>>, vector<128x128xf32>
    %c0_4 = arith.constant 0 : index
    %c0_5 = arith.constant 0 : index
    %5 = vector.load %arg8[%c0_4, %c0_5] : memref<8x128xf32, #tpu.memory_space<vmem>>, vector<8x128xf32>
    %6 = arith.truncf %3 : vector<8x128xf32> to vector<8x128xbf16>
    %7 = arith.truncf %4 : vector<128x128xf32> to vector<128x128xbf16>
    %cst = arith.constant dense<0.000000e+00> : vector<8x128xf32>
    %8 = tpu.matmul %6, %7, %cst {dimension_numbers = #tpu.dot_dimension_numbers<[1], [1], [0], [0], [0, 0, 1, 0], [], []>} : vector<8x128xbf16>, vector<128x128xbf16>, vector<8x128xf32> -> vector<8x128xf32>
    %9 = arith.addf %5, %8 : vector<8x128xf32>
    %c0_6 = arith.constant 0 : index
    %c0_7 = arith.constant 0 : index
    %10 = vector.load %arg8[%c0_6, %c0_7] : memref<8x128xf32, #tpu.memory_space<vmem>>, vector<8x128xf32>
    tpu.vector_store %arg8[%c0_6, %c0_7], %9 {strides = array<i32>} : memref<8x128xf32, #tpu.memory_space<vmem>>, vector<8x128xf32>,
    %c0_8 = arith.constant 0 : index
    %c0_9 = arith.constant 0 : index
    %11 = vector.load %arg9[%c0_8, %c0_9] : memref<8x1xf32, #tpu.memory_space<vmem>>, vector<8x1xf32>
    %12 = arith.mulf %3, %3 : vector<8x128xf32>
    %cst_10 = arith.constant dense<0.000000e+00> : vector<8xf32>
    %13 = vector.multi_reduction <add>, %12, %cst_10 [1] : vector<8x128xf32> to vector<8xf32>
    %14 = vector.shape_cast %13 : vector<8xf32> to vector<8x1xf32>
    %15 = arith.addf %11, %14 : vector<8x1xf32>
    %c0_11 = arith.constant 0 : index
    %c0_12 = arith.constant 0 : index
    %16 = vector.load %arg9[%c0_11, %c0_12] : memref<8x1xf32, #tpu.memory_space<vmem>>, vector<8x1xf32>
    tpu.vector_store %arg9[%c0_11, %c0_12], %15 {strides = array<i32>} : memref<8x1xf32, #tpu.memory_space<vmem>>, vector<8x1xf32>,
    %c0_i32_13 = arith.constant 0 : i32
    %17 = arith.cmpi eq, %arg2, %c0_i32_13 : i32
    %18 = arith.extui %17 : i1 to i32
    %c0_i32_14 = arith.constant 0 : i32
    %19 = arith.cmpi ne, %18, %c0_i32_14 : i32
    scf.if %19 {
      %c0_15 = arith.constant 0 : index
      %c0_16 = arith.constant 0 : index
      %20 = vector.load %arg9[%c0_15, %c0_16] : memref<8x1xf32, #tpu.memory_space<vmem>>, vector<8x1xf32>
      %cst_17 = arith.constant 1.000000e-24 : f32
      %21 = vector.broadcast %cst_17 : f32 to vector<8x1xf32>
      %22 = arith.maximumf %20, %21 : vector<8x1xf32>
      %23 = math.rsqrt %22 : vector<8x1xf32>
      %c0_18 = arith.constant 0 : index
      %c0_19 = arith.constant 0 : index
      %24 = vector.load %arg6[%c0_18, %c0_19] : memref<1x128xf32, #tpu.memory_space<vmem>>, vector<1x128xf32>
      %cst_20 = arith.constant 1.000000e-24 : f32
      %25 = vector.broadcast %cst_20 : f32 to vector<1x128xf32>
      %26 = arith.maximumf %24, %25 : vector<1x128xf32>
      %27 = math.rsqrt %26 : vector<1x128xf32>
      %c0_21 = arith.constant 0 : index
      %28 = memref.load %arg3[%c0_21] : memref<1xf32, #tpu.memory_space<smem>>
      %29 = vector.broadcast %28 : f32 to vector<8x1xf32>
      %30 = arith.mulf %23, %29 : vector<8x1xf32>
      %c0_22 = arith.constant 0 : index
      %c0_23 = arith.constant 0 : index
      %31 = vector.load %arg8[%c0_22, %c0_23] : memref<8x128xf32, #tpu.memory_space<vmem>>, vector<8x128xf32>
      %32 = vector.broadcast %30 : vector<8x1xf32> to vector<8x128xf32>
      %33 = arith.mulf %31, %32 : vector<8x128xf32>
      %34 = vector.broadcast %27 : vector<1x128xf32> to vector<8x128xf32>
      %35 = arith.mulf %33, %34 : vector<8x128xf32>
      %c0_24 = arith.constant 0 : index
      %c0_25 = arith.constant 0 : index
      %36 = vector.load %arg7[%c0_24, %c0_25] : memref<8x128xf32, #tpu.memory_space<vmem>>, vector<8x128xf32>
      tpu.vector_store %arg7[%c0_24, %c0_25], %35 {strides = array<i32>} : memref<8x128xf32, #tpu.memory_space<vmem>>, vector<8x128xf32>,
    } else {
    }
    return
  }
  func.func @transform_0(%arg0: i32, %arg1: i32, %arg2: i32) -> i32 {
    %c0_i32 = arith.constant 0 : i32
    %c0_i32_0 = arith.constant 0 : i32
    return %c0_i32 : i32
  }
  func.func @transform_1(%arg0: i32, %arg1: i32, %arg2: i32) -> (i32, i32) {
    %c0_i32 = arith.constant 0 : i32
    return %arg0, %arg2 : i32, i32
  }
  func.func @transform_2(%arg0: i32, %arg1: i32, %arg2: i32) -> (i32, i32) {
    %c0_i32 = arith.constant 0 : i32
    return %arg1, %arg2 : i32, i32
  }
  func.func @transform_3(%arg0: i32, %arg1: i32, %arg2: i32) -> (i32, i32) {
    %c0_i32 = arith.constant 0 : i32
    %c0_i32_0 = arith.constant 0 : i32
    return %c0_i32, %arg1 : i32, i32
  }
  func.func @transform_4(%arg0: i32, %arg1: i32, %arg2: i32) -> (i32, i32) {
    %c0_i32 = arith.constant 0 : i32
    return %arg0, %arg1 : i32, i32
  }
}

</mosaic_0001>

<llo_original>
// kernel: tpu_custom_call.1
$region0: #{tpu_custom_call.1}
  #allocation0 [shape = 'u32[]', space=smem, size = 0x4, offset = 0x4, fixed_abs, tag = 'smem constant byte address 0x4 - core index']
  #allocation1 [shape = 'u32[144,128]{1,0:T(1,128)}', space=vmem, size = 0x12000, scoped, tag = 'internal scratch']
  #allocation2 [shape = 'f32[8,128]{1,0:T(8,128)}', space=vmem, size = 0x1000, scoped, tag = 'scratch operand']
  #allocation3 [shape = 'f32[8,1]{1,0:T(8,128)}', space=vmem, size = 0x1000, scoped, tag = 'scratch operand']
  #allocation4 [shape = 'f32[1]{0:T(128)S(6)}', space=smem, size = 0x200, scoped, tag = 'scoped memory for tpu_custom_call.1']
  %s0 = inlined_call_operand.<no memory space> [shape: f32[1], index: 0, kind: input, shape index: {}]
  %s1 = inlined_call_operand.hbm [shape: f32[8,128], index: 1, kind: input, shape index: {}]
  %s2 = inlined_call_operand.hbm [shape: f32[128,128], index: 2, kind: input, shape index: {}]
  %s3 = inlined_call_operand.vmem [shape: f32[1,128], index: 3, kind: input, shape index: {}]
  %s4 = inlined_call_operand.hbm [shape: f32[8,128], index: 4, kind: output, shape index: {}]
  %s5 = sld [smem:[#allocation0]]
  $region42: #{tpu_custom_call.1} parent=0
    _
  %s7 = ssub.s32 1, %s5
  %s8 = scalar_select 0, %s7, %s5
  %9 = sst [smem:[#allocation4]] %s0
  $region1: #{tpu_custom_call.1} parent=0
    #allocation5 [shape = 'u8[4096]{0}', space=vmem, size = 0x1000, scoped, tag = 'input window, operand 1, single buffered']
    #allocation6 [shape = 's32[1]{0}', space=sflag, size = 0x4, scoped, tag = 'scoped memory for tpu_custom_call.1']
    #allocation7 [shape = 's32[1]{0}', space=sflag, size = 0x4, scoped, tag = 'scoped memory for tpu_custom_call.1']
    #allocation8 [shape = 'u8[65536]{0}', space=vmem, size = 0x10000, scoped, tag = 'input window, operand 2, single buffered']
    #allocation9 [shape = 's32[1]{0}', space=sflag, size = 0x4, scoped, tag = 'scoped memory for tpu_custom_call.1']
    #allocation10 [shape = 'u8[4096]{0}', space=vmem, size = 0x1000, scoped, tag = 'output window, operand 0, single buffered']
    %10 = vsyncpa [#allocation6], 0
    %11 = vsyncpa [#allocation9], 0
    %12 = vsyncpa [#allocation7], 0
    // Predicated region
    $region2: #{tpu_custom_call.1} parent=1 // pred_check
      _
    $region3: #{tpu_custom_call.1} parent=1 // pred_check_branch
      %14 = sbr.rel (0) target = $region5
    $region4: #{tpu_custom_call.1} parent=1 // pred_region
      _
    $region5: #{tpu_custom_call.1} parent=1 // pred_fallthru
      _
    // Predicated region
    $region6: #{tpu_custom_call.1} parent=1 // pred_check
      _
    $region7: #{tpu_custom_call.1} parent=1 // pred_check_branch
      %16 = sbr.rel (0) target = $region9
    $region8: #{tpu_custom_call.1} parent=1 // pred_region
      %s18 = ssub.s32 128, 128
      %19 = vsyncadd [#allocation6], %s18
      %s21 = sshll.u32 [#allocation5], 4
      %s22 = int_to_ptr.vmem [resolvable:$true] %s21
      %24 = dma.hbm_to_vmem [thread:$0]  %s1, 128, %s22, [#allocation6]
    $region9: #{tpu_custom_call.1} parent=1 // pred_fallthru
      _
    // Predicated region
    $region10: #{tpu_custom_call.1} parent=1 // pred_check
      _
    $region11: #{tpu_custom_call.1} parent=1 // pred_check_branch
      %26 = sbr.rel (0) target = $region13
    $region12: #{tpu_custom_call.1} parent=1 // pred_region
      %s28 = ssub.s32 2048, 2048
      %29 = vsyncadd [#allocation9], %s28
      %s30 = sshll.u32 [#allocation8], 4
      %s31 = int_to_ptr.vmem [resolvable:$true] %s30
      %36 = dma.hbm_to_vmem [thread:$0]  %s2, 2048, %s31, [#allocation9], 128, 128, 8
    $region13: #{tpu_custom_call.1} parent=1 // pred_fallthru
      _
    // Predicated region
    $region14: #{tpu_custom_call.1} parent=1 // pred_check
      _
    $region15: #{tpu_custom_call.1} parent=1 // pred_check_branch
      %38 = sbr.rel (0) target = $region17
    $region16: #{tpu_custom_call.1} parent=1 // pred_region
      _
    $region17: #{tpu_custom_call.1} parent=1 // pred_fallthru
      _
    // Predicated region
    $region18: #{tpu_custom_call.1} parent=1 // pred_check
      _
    $region19: #{tpu_custom_call.1} parent=1 // pred_check_branch
      %40 = sbr.rel (0) target = $region21
    $region20: #{tpu_custom_call.1} parent=1 // pred_region
      %41 = dma.done [#allocation6], 128
    $region21: #{tpu_custom_call.1} parent=1 // pred_fallthru
      _
    // Predicated region
    $region22: #{tpu_custom_call.1} parent=1 // pred_check
      _
    $region23: #{tpu_custom_call.1} parent=1 // pred_check_branch
      %43 = sbr.rel (0) target = $region25
    $region24: #{tpu_custom_call.1} parent=1 // pred_region
      %44 = dma.done [#allocation9], 2048
    $region25: #{tpu_custom_call.1} parent=1 // pred_fallthru
      _
    %p46 = scmp.eq.s32.totalorder 0, 0
    // Predicated region
    $region26: #{tpu_custom_call.1} parent=1 // pred_check
      %p47 = pneg %p46
    $region27: #{tpu_custom_call.1} parent=1 // pred_check_branch
      %49 = sbr.rel (%p47) target = $region29
    $region28: #{tpu_custom_call.1} parent=1 // pred_region
      %50 = vst [vmem:[#allocation2] sm:$0xff] 0.0
      %vm51 = vcmask 7168
      %52 = vst.msk [vmem:[#allocation3] sm:$0xff] %vm51, 0.0
    $region29: #{tpu_custom_call.1} parent=1 // pred_fallthru
      _
    %v53 = vld [vmem:[#allocation5] sm:$0xff]
    %v54 = vld [vmem:[#allocation8] sm:$0xff]
    %v55 = vld [vmem:[#allocation8 + $0x8] sm:$0xff]
    %v56 = vld [vmem:[#allocation8 + $0x10] sm:$0xff]
    %v57 = vld [vmem:[#allocation8 + $0x18] sm:$0xff]
    %v58 = vld [vmem:[#allocation8 + $0x20] sm:$0xff]
    %v59 = vld [vmem:[#allocation8 + $0x28] sm:$0xff]
    %v60 = vld [vmem:[#allocation8 + $0x30] sm:$0xff]
    %v61 = vld [vmem:[#allocation8 + $0x38] sm:$0xff]
    %v62 = vld [vmem:[#allocation8 + $0x40] sm:$0xff]
    %v63 = vld [vmem:[#allocation8 + $0x48] sm:$0xff]
    %v64 = vld [vmem:[#allocation8 + $0x50] sm:$0xff]
    %v65 = vld [vmem:[#allocation8 + $0x58] sm:$0xff]
    %v66 = vld [vmem:[#allocation8 + $0x60] sm:$0xff]
    %v67 = vld [vmem:[#allocation8 + $0x68] sm:$0xff]
    %v68 = vld [vmem:[#allocation8 + $0x70] sm:$0xff]
    %v69 = vld [vmem:[#allocation8 + $0x78] sm:$0xff]
    %v70 = vld [vmem:[#allocation2] sm:$0xff]
    %v71 = vpack.c.bf16 %v53, %v53
    %v72 = vpack.c.bf16 %v55, %v54
    %v73 = vpack.c.bf16 %v57, %v56
    %v74 = vpack.c.bf16 %v59, %v58
    %v75 = vpack.c.bf16 %v61, %v60
    %v76 = vpack.c.bf16 %v63, %v62
    %v77 = vpack.c.bf16 %v65, %v64
    %v78 = vpack.c.bf16 %v67, %v66
    %v79 = vpack.c.bf16 %v69, %v68
    %80 = vmatprep.subr.bf16.mxu0 0
    %81 = vmatpush1.bf16.xpose.msra.mxu0 %v72
    %82 = vmatprep.subr.bf16.mxu0 0
    %83 = vmatpush1.bf16.xpose.msra.mxu0 %v73
    %84 = vmatprep.subr.bf16.mxu0 0
    %85 = vmatpush1.bf16.xpose.msra.mxu0 %v74
    %86 = vmatprep.subr.bf16.mxu0 0
    %87 = vmatpush1.bf16.xpose.msra.mxu0 %v75
    %88 = vmatprep.subr.bf16.mxu0 0
    %89 = vmatpush1.bf16.xpose.msra.mxu0 %v76
    %90 = vmatprep.subr.bf16.mxu0 0
    %91 = vmatpush1.bf16.xpose.msra.mxu0 %v77
    %92 = vmatprep.subr.bf16.mxu0 0
    %93 = vmatpush1.bf16.xpose.msra.mxu0 %v78
    %94 = vmatprep.subr.bf16.mxu0 0
    %95 = vmatpush1.bf16.xpose.msra.mxu0 %v79
    %96 = vmatprep.subr.bf16.mxu0 0
    %97 = vmatpush1.bf16.xpose.msra.mxu0 0
    %98 = vmatprep.subr.bf16.mxu0 0
    %99 = vmatpush1.bf16.xpose.msra.mxu0 0
    %100 = vmatprep.subr.bf16.mxu0 0
    %101 = vmatpush1.bf16.xpose.msra.mxu0 0
    %102 = vmatprep.subr.bf16.mxu0 0
    %103 = vmatpush1.bf16.xpose.msra.mxu0 0
    %104 = vmatprep.subr.bf16.mxu0 0
    %105 = vmatpush1.bf16.xpose.msra.mxu0 0
    %106 = vmatprep.subr.bf16.mxu0 0
    %107 = vmatpush1.bf16.xpose.msra.mxu0 0
    %108 = vmatprep.subr.bf16.mxu0 0
    %109 = vmatpush1.bf16.xpose.msra.mxu0 0
    %110 = vmatprep.subr.bf16.mxu0 0
    %111 = vmatpush1.bf16.xpose.msra.mxu0 0
    %112 = vmatprep.mubr.bf16.mxu0 0
    %113 = vmatmul.mubr.bf16.gmra.mrb[0].mxu0 %v71
    %v114 = vpop.f32.mrb[0].mxu0
    %v115 = vadd.f32 0.0, %v114
    %v116 = vpop.f32.mrb[0].mxu0
    %v117 = vpop.f32.mrb[0].mxu0
    %v118 = vpop.f32.mrb[0].mxu0
    %119 = vdwg.mxu0
    %v120 = vadd.f32 %v70, %v115
    %121 = vst [vmem:[#allocation2] sm:$0xff] %v120
    %v122 = vld [vmem:[#allocation3] sm:$0xff]
    %v123 = vmul.f32 %v53, %v53
    %124 = vadd.xlane.f32.xlu0 %v123
    %v125 = vpop.xlane.xlu0 %124
    %v126 = vadd.f32 %v122, %v125
    %vm127 = vcmask 7168
    %128 = vst.msk [vmem:[#allocation3] sm:$0xff] %vm127, %v126
    // Predicated region
    $region30: #{tpu_custom_call.1} parent=1 // pred_check
      %p129 = pneg %p46
    $region31: #{tpu_custom_call.1} parent=1 // pred_check_branch
      %131 = sbr.rel (%p129) target = $region33
    $region32: #{tpu_custom_call.1} parent=1 // pred_region
      %v132 = vld [vmem:[#allocation3] sm:$0xff]
      %v133 = vmax.f32 %v132, 1e-24
      %v134 = vrsqrt.pop %v133
      %v135 = vld [vmem:[%s3] sm:$0x1]
      %v136 = vmax.f32 %v135, 1e-24
      %v137 = vrsqrt.pop %v136
      %s138 = sld [smem:[#allocation4]]
      %v139 = vstv %s138
      %v140 = vmul.f32 %v134, %v139
      %v141 = vld [vmem:[#allocation2] sm:$0xff]
      %143 = vset.pattern.permute.xlu0 0
      %144 = vperm.xlu0 %143, %v140
      %v145 = vpop.permute.xlu0 %144
      %v147 = vmul.f32 %v141, %v145
      %v149 = vlaneseq
      %v150 = vshrl.u32 %v149, 7
      %v151 = vsub.s32 0, %v150
      %v152 = vrot.slane %v137, %v151
      %v154 = vmul.f32 %v147, %v152
      %155 = vst [vmem:[#allocation10] sm:$0xff] %v154
    $region33: #{tpu_custom_call.1} parent=1 // pred_fallthru
      _
    // Predicated region
    $region34: #{tpu_custom_call.1} parent=1 // pred_check
      _
    $region35: #{tpu_custom_call.1} parent=1 // pred_check_branch
      %157 = sbr.rel (0) target = $region37
    $region36: #{tpu_custom_call.1} parent=1 // pred_region
      %s159 = ssub.s32 128, 128
      %160 = vsyncadd [#allocation7], %s159
      %s162 = sshll.u32 [#allocation10], 4
      %s163 = int_to_ptr.vmem [resolvable:$true] %s162
      %165 = dma.vmem_to_hbm [thread:$0]  %s163, 128, %s4, [#allocation7]
    $region37: #{tpu_custom_call.1} parent=1 // pred_fallthru
      _
    // Predicated region
    $region38: #{tpu_custom_call.1} parent=1 // pred_check
      _
    $region39: #{tpu_custom_call.1} parent=1 // pred_check_branch
      %167 = sbr.rel (0) target = $region41
    $region40: #{tpu_custom_call.1} parent=1 // pred_region
      %168 = dma.done [#allocation7], 128
    $region41: #{tpu_custom_call.1} parent=1 // pred_fallthru
      _
    %169 = vsyncpa [#allocation6], 1
    %170 = vsyncpa [#allocation9], 1
    %171 = vsyncpa [#allocation7], 1

</llo_original>
